<compile_context>
chip_gen: v7x
topology: tpu7x:2x2x1
jax: 0.10.0
libtpu: 0.0.40
codegen_flags: <defaults>
</compile_context>

<pallas_src>
import jax
import jax.numpy as jnp
import numpy as np
from jax.experimental import pallas as pl
from jax.experimental.pallas import tpu as pltpu


def _leaky(v):
    # LeakyReLU(0.2)
    return jnp.where(v > 0, v, 0.2 * v)


def _round_up(n, m):
    return ((n + m - 1) // m) * m


_MAT_ORDER = ("w1", "w2", "w3", "vw", "uw", "c1", "c2", "c3")
_ROW_ORDER = ("b1", "b2", "b3", "vb", "ub", "ww", "wb", "cb1", "cb2", "cb3")


def _pack_params(params, ws_pad):
    """Host-side (numpy) one-time packing.

    Weights go into one (R, wmax) f32 slab using a 2-band shelf packer (bands are
    128 lanes wide): w1 (padded 76->ws_pad rows so the first matmul contracts over a
    full 128-lane vreg) spans the full width at the top; every other matrix has
    <=128 cols and is stacked into the band with the lowest row cursor.  All (1, n)
    rows (biases + the w-layer weight + its scalar bias wb) go into one (1, C) row
    buffer.  All offsets are static Python ints -> zero-cost ref views in the kernel.
    """
    f32 = np.float32
    mats = {}
    w1 = np.asarray(params["w1"], f32)                        # (76, 256)
    w1p = np.zeros((ws_pad, w1.shape[1]), f32)
    w1p[: w1.shape[0], :] = w1
    mats["w1"] = w1p
    for name in _MAT_ORDER[1:]:
        mats[name] = np.asarray(params[name], f32)

    band = 128
    wmax = _round_up(max(int(m.shape[1]) for m in mats.values()), band)
    n_bands = wmax // band

    w_off = {"w1": (0, 0, int(mats["w1"].shape[0]), int(mats["w1"].shape[1]))}
    cursors = [_round_up(int(mats["w1"].shape[0]), 8)] * n_bands
    for name in sorted(_MAT_ORDER[1:], key=lambda n: -mats[n].shape[0]):
        rows, cols = (int(s) for s in mats[name].shape)
        assert cols <= band, f"{name} wider than one band"
        b = int(np.argmin(cursors))
        w_off[name] = (cursors[b], b * band, rows, cols)
        cursors[b] += _round_up(rows, 8)
    R = max(cursors)
    w_packed = np.zeros((R, wmax), f32)
    for name in _MAT_ORDER:
        r0, c0, rows, cols = w_off[name]
        w_packed[r0:r0 + rows, c0:c0 + cols] = mats[name]

    b_off, c = {}, 0
    for name in _ROW_ORDER:
        n = int(np.asarray(params[name]).reshape(1, -1).shape[1])
        b_off[name] = (c, n)
        c += _round_up(n, 128)
    b_packed = np.zeros((1, c), f32)
    for name in _ROW_ORDER:
        c0, n = b_off[name]
        b_packed[:, c0:c0 + n] = np.asarray(params[name], f32).reshape(1, -1)

    return w_packed, b_packed, w_off, b_off


def _make_kernel(pooling, B, K, M, L, w_off, b_off, out_width):
    def kernel(xs_ref, madd_ref, wp_ref, bp_ref, out_ref):
        f32 = jnp.float32

        def w_(name):                    # static sub-block view of the packed weights
            r0, c0, rows, cols = w_off[name]
            return wp_ref[r0:r0 + rows, c0:c0 + cols]

        def b_(name):                    # static (1, n) view of the packed row buffer
            c0, n = b_off[name]
            return bp_ref[0:1, c0:c0 + n]

        # ---- g(): embedding MLP on (B*K, ws_pad); Dropout = identity (eval) ----
        # TODO(synk): training-mode stochastic Dropout is not implemented.
        xs = xs_ref[...]
        h = _leaky(jnp.dot(xs, w_("w1"), preferred_element_type=f32) + b_("b1"))
        h = _leaky(jnp.dot(h, w_("w2"), preferred_element_type=f32) + b_("b2"))
        h = jnp.dot(h, w_("w3"), preferred_element_type=f32) + b_("b3")        # (BK, M)

        # ---- (gated) attention scores ----
        att = jnp.tanh(jnp.dot(h, w_("vw"), preferred_element_type=f32) + b_("vb"))
        if pooling == "gated_attention":
            att = att * jax.nn.sigmoid(
                jnp.dot(h, w_("uw"), preferred_element_type=f32) + b_("ub"))
        att3 = att.reshape(B, K, L)
        # additive mask (0 / -1e30) precomputed in the wrapper; wb comes from the row buf
        scores = (jnp.sum(att3 * b_("ww").reshape(1, 1, L), axis=-1)
                  + b_("wb") + madd_ref[...])                                  # (B, K)

        # ---- masked softmax over the bag dimension ----
        scores = scores - jnp.max(scores, axis=-1, keepdims=True)
        e = jnp.exp(scores)
        a = e * pl.reciprocal(jnp.sum(e, axis=-1, keepdims=True), approx=True)

        # ---- weighted bag sum: VPU broadcast-multiply + sublane reduce (MXU stays free)
        h3 = h.reshape(B, K, M)
        z = jnp.sum(a[:, :, None] * h3, axis=1)                                # (B, M)

        # ---- classifier head; Dropout = identity (eval) ----
        t = _leaky(jnp.dot(z, w_("c1"), preferred_element_type=f32) + b_("cb1"))
        t = _leaky(jnp.dot(t, w_("c2"), preferred_element_type=f32) + b_("cb2"))
        logit = jnp.dot(t, w_("c3"), preferred_element_type=f32) + b_("cb3")   # (B, 2)

        # ---- single unmasked lane-dense (B, out_width) store ----
        parts = [z, logit]
        pad = out_width - (M + 2)
        if pad > 0:
            parts.append(jnp.zeros((B, pad), f32))
        out_ref[...] = jnp.concatenate(parts, axis=-1)

    return kernel


def make_attention_mil_forward(params, pooling="attention"):
    """Pack weights once and return a jitted forward(x, x_mask) -> (z, logit)."""
    ws_in = int(np.asarray(params["w1"]).shape[0])            # 76
    ws_pad = _round_up(ws_in, 128)
    M = int(np.asarray(params["w3"]).shape[1])
    L = int(np.asarray(params["vw"]).shape[1])
    out_width = _round_up(M + 2, 128)

    w_np, b_np, w_off, b_off = _pack_params(params, ws_pad)
    w_packed = jnp.asarray(w_np)          # closed over -> compile-time constants,
    b_packed = jnp.asarray(b_np)          # no per-call packing fusions / HBM traffic

    @jax.jit
    def forward(x, x_mask):
        B, K, _, Ws = x.shape
        BK = B * K
        # Channel reduction, 76->128 contraction-dim pad, bag flatten, and the
        # additive mask are done here so they fuse into the surrounding XLA program
        # and the kernel only DMAs clean, lane-dense tiles.
        xs = jnp.sum(x.astype(jnp.float32), axis=2).reshape(BK, Ws)
        xs = jnp.pad(xs, ((0, 0), (0, ws_pad - Ws)))
        madd = jnp.where(x_mask > 0, 0.0, -1e30).astype(jnp.float32)   # (B, K)

        kernel = _make_kernel(pooling, B, K, M, L, w_off, b_off, out_width)
        vmem = pl.BlockSpec(memory_space=pltpu.MemorySpace.VMEM)
        slab = pl.pallas_call(
            kernel,
            out_shape=jax.ShapeDtypeStruct((B, out_width), jnp.float32),
            in_specs=[vmem, vmem, vmem, vmem],
            out_specs=vmem,
        )(xs, madd, w_packed, b_packed)
        return slab[:, :M], slab[:, M:M + 2]

    return forward


def reference_forward(x, x_mask, params, pooling="attention"):
    xs = jnp.sum(x, axis=2)                                   # (B, K, Ws)
    h = _leaky(xs @ params["w1"] + params["b1"])
    h = _leaky(h @ params["w2"] + params["b2"])
    h = h @ params["w3"] + params["b3"]                       # (B, K, M)
    att = jnp.tanh(h @ params["vw"] + params["vb"])
    if pooling == "gated_attention":
        att = att * jax.nn.sigmoid(h @ params["uw"] + params["ub"])
    a = jnp.sum(att * params["ww"].reshape(1, 1, -1), axis=-1) + params["wb"][0, 0]
    a = jnp.where(x_mask > 0, a, -1e30)
    a = jax.nn.softmax(a, axis=-1)
    z = jnp.sum(a[..., None] * h, axis=1)
    t = _leaky(z @ params["c1"] + params["cb1"])
    t = _leaky(t @ params["c2"] + params["cb2"])
    logit = t @ params["c3"] + params["cb3"]
    return z, logit


def init_params(key, M, L):
    shapes = {
        "w1": (76, 256), "b1": (1, 256),
        "w2": (256, 128), "b2": (1, 128),
        "w3": (128, M), "b3": (1, M),
        "vw": (M, L), "vb": (1, L),
        "uw": (M, L), "ub": (1, L),
        "ww": (1, L), "wb": (1, 1),
        "c1": (M, 32), "cb1": (1, 32),
        "c2": (32, 16), "cb2": (1, 16),
        "c3": (16, 2), "cb3": (1, 2),
    }
    params = {}
    keys = jax.random.split(key, len(shapes))
    for k_, (name, shp) in zip(keys, sorted(shapes.items())):
        fan_in = shp[0] if shp[0] > 1 else max(shp)
        params[name] = (jax.random.normal(k_, shp, dtype=jnp.float32)
                        * (1.0 / np.sqrt(fan_in)))
    return params


if __name__ == "__main__":
    key = jax.random.PRNGKey(0)
    k_x, k_p = jax.random.split(key)

    # Small deterministic example: B=2, K (bag length)=8, C=4 channels, Ws=76
    # (Ws=76 is forced by the first Linear(76, 256)).  M=64, L=32.
    B, K, C, Ws = 2, 8, 4, 76
    M, L = 64, 32

    x = jax.random.normal(k_x, (B, K, C, Ws), dtype=jnp.float32)
    lengths = jnp.array([8, 5], dtype=jnp.int32)
    x_mask = (jnp.arange(K)[None, :] < lengths[:, None]).astype(jnp.float32)  # (B, K)

    params = init_params(k_p, M, L)

    for pooling in ("attention", "gated_attention"):
        forward = make_attention_mil_forward(params, pooling=pooling)
        z, logit = forward(x, x_mask)
        jax.block_until_ready((z, logit))
        z_ref, logit_ref = reference_forward(x, x_mask, params, pooling=pooling)
        np.testing.assert_allclose(np.asarray(z), np.asarray(z_ref), rtol=1e-2, atol=1e-2)
        np.testing.assert_allclose(np.asarray(logit), np.asarray(logit_ref), rtol=1e-2, atol=1e-2)

    print("KERNEL_OK")
</pallas_src>

<mosaic_0001>
module attributes {stable_mosaic.version = 11 : i64} {
  func.func @kernel(%arg0: memref<16x128xf32, #tpu.memory_space<vmem>>, %arg1: memref<2x8xf32, #tpu.memory_space<vmem>>, %arg2: memref<448x256xf32, #tpu.memory_space<vmem>>, %arg3: memref<1x1408xf32, #tpu.memory_space<vmem>>, %arg4: memref<2x128xf32, #tpu.memory_space<vmem>>) attributes {dimension_semantics = [], scalar_prefetch = 0 : i64, scratch_operands = 0 : i64, tpu.core_type = #tpu.core_type<tc>} {
    %c0 = arith.constant 0 : index
    %c0_0 = arith.constant 0 : index
    %0 = vector.load %arg0[%c0, %c0_0] : memref<16x128xf32, #tpu.memory_space<vmem>>, vector<16x128xf32>
    %c0_1 = arith.constant 0 : index
    %c0_2 = arith.constant 0 : index
    %1 = vector.load %arg2[%c0_1, %c0_2] : memref<448x256xf32, #tpu.memory_space<vmem>>, vector<128x256xf32>
    %cst = arith.constant dense<0.000000e+00> : vector<16x256xf32>
    %2 = tpu.matmul %0, %1, %cst {dimension_numbers = #tpu.dot_dimension_numbers<[1], [0], [0], [1], [0, 0, 1, 1], [], []>} : vector<16x128xf32>, vector<128x256xf32>, vector<16x256xf32> -> vector<16x256xf32>
    %c0_3 = arith.constant 0 : index
    %c0_4 = arith.constant 0 : index
    %3 = vector.load %arg3[%c0_3, %c0_4] : memref<1x1408xf32, #tpu.memory_space<vmem>>, vector<1x256xf32>
    %4 = vector.broadcast %3 : vector<1x256xf32> to vector<16x256xf32>
    %5 = arith.addf %2, %4 : vector<16x256xf32>
    %cst_5 = arith.constant 0.000000e+00 : f32
    %6 = vector.broadcast %cst_5 : f32 to vector<16x256xf32>
    %7 = arith.cmpf ogt, %5, %6 : vector<16x256xf32>
    %cst_6 = arith.constant 2.000000e-01 : f32
    %8 = vector.broadcast %cst_6 : f32 to vector<16x256xf32>
    %9 = arith.mulf %8, %5 : vector<16x256xf32>
    %10 = arith.select %7, %5, %9 : vector<16x256xi1>, vector<16x256xf32>
    %c128 = arith.constant 128 : index
    %c0_7 = arith.constant 0 : index
    %11 = vector.load %arg2[%c128, %c0_7] : memref<448x256xf32, #tpu.memory_space<vmem>>, vector<256x128xf32>
    %cst_8 = arith.constant dense<0.000000e+00> : vector<16x128xf32>
    %12 = tpu.matmul %10, %11, %cst_8 {dimension_numbers = #tpu.dot_dimension_numbers<[1], [0], [0], [1], [0, 0, 1, 1], [], []>} : vector<16x256xf32>, vector<256x128xf32>, vector<16x128xf32> -> vector<16x128xf32>
    %c0_9 = arith.constant 0 : index
    %c256 = arith.constant 256 : index
    %13 = vector.load %arg3[%c0_9, %c256] : memref<1x1408xf32, #tpu.memory_space<vmem>>, vector<1x128xf32>
    %14 = vector.broadcast %13 : vector<1x128xf32> to vector<16x128xf32>
    %15 = arith.addf %12, %14 : vector<16x128xf32>
    %cst_10 = arith.constant 0.000000e+00 : f32
    %16 = vector.broadcast %cst_10 : f32 to vector<16x128xf32>
    %17 = arith.cmpf ogt, %15, %16 : vector<16x128xf32>
    %cst_11 = arith.constant 2.000000e-01 : f32
    %18 = vector.broadcast %cst_11 : f32 to vector<16x128xf32>
    %19 = arith.mulf %18, %15 : vector<16x128xf32>
    %20 = arith.select %17, %15, %19 : vector<16x128xi1>, vector<16x128xf32>
    %c128_12 = arith.constant 128 : index
    %c128_13 = arith.constant 128 : index
    %21 = vector.load %arg2[%c128_12, %c128_13] : memref<448x256xf32, #tpu.memory_space<vmem>>, vector<128x64xf32>
    %cst_14 = arith.constant dense<0.000000e+00> : vector<16x64xf32>
    %22 = tpu.matmul %20, %21, %cst_14 {dimension_numbers = #tpu.dot_dimension_numbers<[1], [0], [0], [1], [0, 0, 1, 1], [], []>} : vector<16x128xf32>, vector<128x64xf32>, vector<16x64xf32> -> vector<16x64xf32>
    %c0_15 = arith.constant 0 : index
    %c384 = arith.constant 384 : index
    %23 = vector.load %arg3[%c0_15, %c384] : memref<1x1408xf32, #tpu.memory_space<vmem>>, vector<1x64xf32>
    %24 = vector.broadcast %23 : vector<1x64xf32> to vector<16x64xf32>
    %25 = arith.addf %22, %24 : vector<16x64xf32>
    %c256_16 = arith.constant 256 : index
    %c128_17 = arith.constant 128 : index
    %26 = vector.load %arg2[%c256_16, %c128_17] : memref<448x256xf32, #tpu.memory_space<vmem>>, vector<64x32xf32>
    %cst_18 = arith.constant dense<0.000000e+00> : vector<16x32xf32>
    %27 = tpu.matmul %25, %26, %cst_18 {dimension_numbers = #tpu.dot_dimension_numbers<[1], [0], [0], [1], [0, 0, 1, 1], [], []>} : vector<16x64xf32>, vector<64x32xf32>, vector<16x32xf32> -> vector<16x32xf32>
    %c0_19 = arith.constant 0 : index
    %c512 = arith.constant 512 : index
    %28 = vector.load %arg3[%c0_19, %c512] : memref<1x1408xf32, #tpu.memory_space<vmem>>, vector<1x32xf32>
    %29 = vector.broadcast %28 : vector<1x32xf32> to vector<16x32xf32>
    %30 = arith.addf %27, %29 : vector<16x32xf32>
    %31 = math.tanh %30 : vector<16x32xf32>
    %32 = vector.shape_cast %31 : vector<16x32xf32> to vector<2x8x32xf32>
    %c0_20 = arith.constant 0 : index
    %c768 = arith.constant 768 : index
    %33 = vector.load %arg3[%c0_20, %c768] : memref<1x1408xf32, #tpu.memory_space<vmem>>, vector<1x32xf32>
    %34 = vector.shape_cast %33 : vector<1x32xf32> to vector<1x1x32xf32>
    %35 = vector.broadcast %34 : vector<1x1x32xf32> to vector<2x8x32xf32>
    %36 = arith.mulf %32, %35 : vector<2x8x32xf32>
    %cst_21 = arith.constant dense<0.000000e+00> : vector<2x8xf32>
    %37 = vector.multi_reduction <add>, %36, %cst_21 [2] : vector<2x8x32xf32> to vector<2x8xf32>
    %c0_22 = arith.constant 0 : index
    %c896 = arith.constant 896 : index
    %38 = vector.load %arg3[%c0_22, %c896] : memref<1x1408xf32, #tpu.memory_space<vmem>>, vector<1x1xf32>
    %39 = vector.broadcast %38 : vector<1x1xf32> to vector<2x8xf32>
    %40 = arith.addf %37, %39 : vector<2x8xf32>
    %c0_23 = arith.constant 0 : index
    %c0_24 = arith.constant 0 : index
    %41 = vector.load %arg1[%c0_23, %c0_24] : memref<2x8xf32, #tpu.memory_space<vmem>>, vector<2x8xf32>
    %42 = arith.addf %40, %41 : vector<2x8xf32>
    %cst_25 = arith.constant dense<0xFF800000> : vector<2xf32>
    %43 = vector.multi_reduction <maximumf>, %42, %cst_25 [1] : vector<2x8xf32> to vector<2xf32>
    %44 = vector.shape_cast %43 : vector<2xf32> to vector<2x1xf32>
    %45 = vector.broadcast %44 : vector<2x1xf32> to vector<2x8xf32>
    %46 = arith.subf %42, %45 : vector<2x8xf32>
    %47 = math.exp %46 : vector<2x8xf32>
    %cst_26 = arith.constant dense<0.000000e+00> : vector<2xf32>
    %48 = vector.multi_reduction <add>, %47, %cst_26 [1] : vector<2x8xf32> to vector<2xf32>
    %49 = vector.shape_cast %48 : vector<2xf32> to vector<2x1xf32>
    %50 = tpu.reciprocal %49 {approx = true} : vector<2x1xf32> -> vector<2x1xf32>
    %51 = vector.broadcast %50 : vector<2x1xf32> to vector<2x8xf32>
    %52 = arith.mulf %47, %51 : vector<2x8xf32>
    %53 = vector.shape_cast %25 : vector<16x64xf32> to vector<2x8x64xf32>
    %54 = vector.shape_cast %52 : vector<2x8xf32> to vector<2x8x1xf32>
    %55 = vector.broadcast %54 : vector<2x8x1xf32> to vector<2x8x64xf32>
    %56 = arith.mulf %55, %53 : vector<2x8x64xf32>
    %cst_27 = arith.constant dense<0.000000e+00> : vector<2x64xf32>
    %57 = vector.multi_reduction <add>, %56, %cst_27 [1] : vector<2x8x64xf32> to vector<2x64xf32>
    %c384_28 = arith.constant 384 : index
    %c0_29 = arith.constant 0 : index
    %58 = vector.load %arg2[%c384_28, %c0_29] : memref<448x256xf32, #tpu.memory_space<vmem>>, vector<64x32xf32>
    %cst_30 = arith.constant dense<0.000000e+00> : vector<2x32xf32>
    %59 = tpu.matmul %57, %58, %cst_30 {dimension_numbers = #tpu.dot_dimension_numbers<[1], [0], [0], [1], [0, 0, 1, 1], [], []>} : vector<2x64xf32>, vector<64x32xf32>, vector<2x32xf32> -> vector<2x32xf32>
    %c0_31 = arith.constant 0 : index
    %c1024 = arith.constant 1024 : index
    %60 = vector.load %arg3[%c0_31, %c1024] : memref<1x1408xf32, #tpu.memory_space<vmem>>, vector<1x32xf32>
    %61 = vector.broadcast %60 : vector<1x32xf32> to vector<2x32xf32>
    %62 = arith.addf %59, %61 : vector<2x32xf32>
    %cst_32 = arith.constant 0.000000e+00 : f32
    %63 = vector.broadcast %cst_32 : f32 to vector<2x32xf32>
    %64 = arith.cmpf ogt, %62, %63 : vector<2x32xf32>
    %cst_33 = arith.constant 2.000000e-01 : f32
    %65 = vector.broadcast %cst_33 : f32 to vector<2x32xf32>
    %66 = arith.mulf %65, %62 : vector<2x32xf32>
    %67 = arith.select %64, %62, %66 : vector<2x32xi1>, vector<2x32xf32>
    %c384_34 = arith.constant 384 : index
    %c128_35 = arith.constant 128 : index
    %68 = vector.load %arg2[%c384_34, %c128_35] : memref<448x256xf32, #tpu.memory_space<vmem>>, vector<32x16xf32>
    %cst_36 = arith.constant dense<0.000000e+00> : vector<2x16xf32>
    %69 = tpu.matmul %67, %68, %cst_36 {dimension_numbers = #tpu.dot_dimension_numbers<[1], [0], [0], [1], [0, 0, 1, 1], [], []>} : vector<2x32xf32>, vector<32x16xf32>, vector<2x16xf32> -> vector<2x16xf32>
    %c0_37 = arith.constant 0 : index
    %c1152 = arith.constant 1152 : index
    %70 = vector.load %arg3[%c0_37, %c1152] : memref<1x1408xf32, #tpu.memory_space<vmem>>, vector<1x16xf32>
    %71 = vector.broadcast %70 : vector<1x16xf32> to vector<2x16xf32>
    %72 = arith.addf %69, %71 : vector<2x16xf32>
    %cst_38 = arith.constant 0.000000e+00 : f32
    %73 = vector.broadcast %cst_38 : f32 to vector<2x16xf32>
    %74 = arith.cmpf ogt, %72, %73 : vector<2x16xf32>
    %cst_39 = arith.constant 2.000000e-01 : f32
    %75 = vector.broadcast %cst_39 : f32 to vector<2x16xf32>
    %76 = arith.mulf %75, %72 : vector<2x16xf32>
    %77 = arith.select %74, %72, %76 : vector<2x16xi1>, vector<2x16xf32>
    %c416 = arith.constant 416 : index
    %c128_40 = arith.constant 128 : index
    %78 = vector.load %arg2[%c416, %c128_40] : memref<448x256xf32, #tpu.memory_space<vmem>>, vector<16x2xf32>
    %cst_41 = arith.constant dense<0.000000e+00> : vector<2x2xf32>
    %79 = tpu.matmul %77, %78, %cst_41 {dimension_numbers = #tpu.dot_dimension_numbers<[1], [0], [0], [1], [0, 0, 1, 1], [], []>} : vector<2x16xf32>, vector<16x2xf32>, vector<2x2xf32> -> vector<2x2xf32>
    %c0_42 = arith.constant 0 : index
    %c1280 = arith.constant 1280 : index
    %80 = vector.load %arg3[%c0_42, %c1280] : memref<1x1408xf32, #tpu.memory_space<vmem>>, vector<1x2xf32>
    %81 = vector.broadcast %80 : vector<1x2xf32> to vector<2x2xf32>
    %82 = arith.addf %79, %81 : vector<2x2xf32>
    %cst_43 = arith.constant 0.000000e+00 : f32
    %83 = vector.broadcast %cst_43 : f32 to vector<2x62xf32>
    %84 = tpu.concatenate %57, %82, %83 in 1 : vector<2x64xf32>, vector<2x2xf32>, vector<2x62xf32> -> vector<2x128xf32>
    %c0_44 = arith.constant 0 : index
    %c0_45 = arith.constant 0 : index
    %85 = vector.load %arg4[%c0_44, %c0_45] : memref<2x128xf32, #tpu.memory_space<vmem>>, vector<2x128xf32>
    tpu.vector_store %arg4[%c0_44, %c0_45], %84 {strides = array<i32>} : memref<2x128xf32, #tpu.memory_space<vmem>>, vector<2x128xf32>,
    return
  }
}

</mosaic_0001>

<llo_original>
// kernel: forward.1
$region0: #{forward.1}
  #allocation0 [shape = 'u32[]', space=smem, size = 0x4, offset = 0x4, fixed_abs, tag = 'smem constant byte address 0x4 - core index']
  #allocation1 [shape = 'u32[144,128]{1,0:T(1,128)}', space=vmem, size = 0x12000, scoped, tag = 'internal scratch']
  %s0 = inlined_call_operand.vmem [shape: f32[16,128], index: 0, kind: input, shape index: {}]
  %s1 = inlined_call_operand.vmem [shape: f32[2,8], index: 1, kind: input, shape index: {}]
  %s2 = inlined_call_operand.hbm [shape: f32[448,256], index: 2, kind: input, shape index: {}]
  %s3 = inlined_call_operand.vmem [shape: f32[1,1408], index: 3, kind: input, shape index: {}]
  %s4 = inlined_call_operand.vmem [shape: f32[2,128], index: 4, kind: output, shape index: {}]
  %s5 = sld [smem:[#allocation0]]
  $region30: #{forward.1} parent=0
    _
  %s7 = ssub.s32 1, %s5
  %s8 = scalar_select 0, %s7, %s5
  $region1: #{forward.1} parent=0
    #allocation2 [shape = 'u8[458752]{0}', space=vmem, size = 0x70000, scoped, tag = 'input window, operand 2, single buffered']
    #allocation3 [shape = 's32[1]{0}', space=sflag, size = 0x4, scoped, tag = 'scoped memory for forward.1']
    %9 = vsyncpa [#allocation3], 0
    // Predicated region
    $region2: #{forward.1} parent=1 // pred_check
      _
    $region3: #{forward.1} parent=1 // pred_check_branch
      %11 = sbr.rel (0) target = $region5
    $region4: #{forward.1} parent=1 // pred_region
      _
    $region5: #{forward.1} parent=1 // pred_fallthru
      _
    // Predicated region
    $region6: #{forward.1} parent=1 // pred_check
      _
    $region7: #{forward.1} parent=1 // pred_check_branch
      %13 = sbr.rel (0) target = $region9
    $region8: #{forward.1} parent=1 // pred_region
      _
    $region9: #{forward.1} parent=1 // pred_fallthru
      _
    // Predicated region
    $region10: #{forward.1} parent=1 // pred_check
      _
    $region11: #{forward.1} parent=1 // pred_check_branch
      %15 = sbr.rel (0) target = $region13
    $region12: #{forward.1} parent=1 // pred_region
      %s17 = ssub.s32 14336, 14336
      %18 = vsyncadd [#allocation3], %s17
      %s19 = sshll.u32 [#allocation2], 4
      %s20 = int_to_ptr.vmem [resolvable:$true] %s19
      %25 = dma.hbm_to_vmem [thread:$0]  %s2, 14336, %s20, [#allocation3], 256, 256, 16
    $region13: #{forward.1} parent=1 // pred_fallthru
      _
    // Predicated region
    $region14: #{forward.1} parent=1 // pred_check
      _
    $region15: #{forward.1} parent=1 // pred_check_branch
      %27 = sbr.rel (0) target = $region17
    $region16: #{forward.1} parent=1 // pred_region
      _
    $region17: #{forward.1} parent=1 // pred_fallthru
      _
    // Predicated region
    $region18: #{forward.1} parent=1 // pred_check
      _
    $region19: #{forward.1} parent=1 // pred_check_branch
      %29 = sbr.rel (0) target = $region21
    $region20: #{forward.1} parent=1 // pred_region
      %30 = dma.done [#allocation3], 14336
    $region21: #{forward.1} parent=1 // pred_fallthru
      _
    %v31 = vld [vmem:[%s0] sm:$0xff]
    %v32 = vld [vmem:[%s0 + $0x8] sm:$0xff]
    %v33 = vld [vmem:[#allocation2] sm:$0xff]
    %v34 = vld [vmem:[#allocation2 + $0x8] sm:$0xff]
    %v35 = vld [vmem:[#allocation2 + $0x10] sm:$0xff]
    %v36 = vld [vmem:[#allocation2 + $0x18] sm:$0xff]
    %v37 = vld [vmem:[#allocation2 + $0x20] sm:$0xff]
    %v38 = vld [vmem:[#allocation2 + $0x28] sm:$0xff]
    %v39 = vld [vmem:[#allocation2 + $0x30] sm:$0xff]
    %v40 = vld [vmem:[#allocation2 + $0x38] sm:$0xff]
    %v41 = vld [vmem:[#allocation2 + $0x40] sm:$0xff]
    %v42 = vld [vmem:[#allocation2 + $0x48] sm:$0xff]
    %v43 = vld [vmem:[#allocation2 + $0x50] sm:$0xff]
    %v44 = vld [vmem:[#allocation2 + $0x58] sm:$0xff]
    %v45 = vld [vmem:[#allocation2 + $0x60] sm:$0xff]
    %v46 = vld [vmem:[#allocation2 + $0x68] sm:$0xff]
    %v47 = vld [vmem:[#allocation2 + $0x70] sm:$0xff]
    %v48 = vld [vmem:[#allocation2 + $0x78] sm:$0xff]
    %v49 = vld [vmem:[#allocation2 + $0x80] sm:$0xff]
    %v50 = vld [vmem:[#allocation2 + $0x88] sm:$0xff]
    %v51 = vld [vmem:[#allocation2 + $0x90] sm:$0xff]
    %v52 = vld [vmem:[#allocation2 + $0x98] sm:$0xff]
    %v53 = vld [vmem:[#allocation2 + $0xa0] sm:$0xff]
    %v54 = vld [vmem:[#allocation2 + $0xa8] sm:$0xff]
    %v55 = vld [vmem:[#allocation2 + $0xb0] sm:$0xff]
    %v56 = vld [vmem:[#allocation2 + $0xb8] sm:$0xff]
    %v57 = vld [vmem:[#allocation2 + $0xc0] sm:$0xff]
    %v58 = vld [vmem:[#allocation2 + $0xc8] sm:$0xff]
    %v59 = vld [vmem:[#allocation2 + $0xd0] sm:$0xff]
    %v60 = vld [vmem:[#allocation2 + $0xd8] sm:$0xff]
    %v61 = vld [vmem:[#allocation2 + $0xe0] sm:$0xff]
    %v62 = vld [vmem:[#allocation2 + $0xe8] sm:$0xff]
    %v63 = vld [vmem:[#allocation2 + $0xf0] sm:$0xff]
    %v64 = vld [vmem:[#allocation2 + $0xf8] sm:$0xff]
    %v65 = vld [vmem:[%s3] sm:$0x3]
    %v67 = vlaneseq
    %v68 = vshrl.u32 %v67, 7
    %v69 = vsub.s32 0, %v68
    %v70 = vrot.slane %v65, %v69
    %v71 = vlaneseq
    %v72 = vshrl.u32 %v71, 7
    %v73 = vsub.s32 1, %v72
    %v74 = vrot.slane %v65, %v73
    %77 = vmatprep.subr.mxu0 %v34
    %78 = vmatpush1.msra.mxu0 %v33
    %79 = vmatprep.subr.mxu0 %v36
    %80 = vmatpush1.msra.mxu0 %v35
    %81 = vmatprep.subr.mxu0 %v38
    %82 = vmatpush1.msra.mxu0 %v37
    %83 = vmatprep.subr.mxu0 %v40
    %84 = vmatpush1.msra.mxu0 %v39
    %85 = vmatprep.subr.mxu0 %v42
    %86 = vmatpush1.msra.mxu0 %v41
    %87 = vmatprep.subr.mxu0 %v44
    %88 = vmatpush1.msra.mxu0 %v43
    %89 = vmatprep.subr.mxu0 %v46
    %90 = vmatpush1.msra.mxu0 %v45
    %91 = vmatprep.subr.mxu0 %v48
    %92 = vmatpush1.msra.mxu0 %v47
    %93 = vmatprep.subr.mxu0 %v50
    %94 = vmatpush1.msra.mxu0 %v49
    %95 = vmatprep.subr.mxu0 %v52
    %96 = vmatpush1.msra.mxu0 %v51
    %97 = vmatprep.subr.mxu0 %v54
    %98 = vmatpush1.msra.mxu0 %v53
    %99 = vmatprep.subr.mxu0 %v56
    %100 = vmatpush1.msra.mxu0 %v55
    %101 = vmatprep.subr.mxu0 %v58
    %102 = vmatpush1.msra.mxu0 %v57
    %103 = vmatprep.subr.mxu0 %v60
    %104 = vmatpush1.msra.mxu0 %v59
    %105 = vmatprep.subr.mxu0 %v62
    %106 = vmatpush1.msra.mxu0 %v61
    %107 = vmatprep.subr.mxu0 %v64
    %108 = vmatpush1.msra.mxu0 %v63
    %109 = vmatprep.subr.mxu0 0.0
    %110 = vmatpush1.msra.mxu0 0.0
    %111 = vmatprep.subr.mxu0 0.0
    %112 = vmatpush1.msra.mxu0 0.0
    %113 = vmatprep.subr.mxu0 0.0
    %114 = vmatpush1.msra.mxu0 0.0
    %115 = vmatprep.subr.mxu0 0.0
    %116 = vmatpush1.msra.mxu0 0.0
    %117 = vmatprep.subr.mxu0 0.0
    %118 = vmatpush1.msra.mxu0 0.0
    %119 = vmatprep.subr.mxu0 0.0
    %120 = vmatpush1.msra.mxu0 0.0
    %121 = vmatprep.subr.mxu0 0.0
    %122 = vmatpush1.msra.mxu0 0.0
    %123 = vmatprep.subr.mxu0 0.0
    %124 = vmatpush1.msra.mxu0 0.0
    %125 = vmatprep.subr.mxu0 0.0
    %126 = vmatpush1.msra.mxu0 0.0
    %127 = vmatprep.subr.mxu0 0.0
    %128 = vmatpush1.msra.mxu0 0.0
    %129 = vmatprep.subr.mxu0 0.0
    %130 = vmatpush1.msra.mxu0 0.0
    %131 = vmatprep.subr.mxu0 0.0
    %132 = vmatpush1.msra.mxu0 0.0
    %133 = vmatprep.subr.mxu0 0.0
    %134 = vmatpush1.msra.mxu0 0.0
    %135 = vmatprep.subr.mxu0 0.0
    %136 = vmatpush1.msra.mxu0 0.0
    %137 = vmatprep.subr.mxu0 0.0
    %138 = vmatpush1.msra.mxu0 0.0
    %139 = vmatprep.subr.mxu0 0.0
    %140 = vmatpush1.msra.mxu0 0.0
    %141 = vmatprep.mubr.f32.mxu0 0.0
    %142 = vmatmul.mubr.f32.gmra.mrb[0].mxu0 %v31
    %v143 = vpop.f32.mrb[0].mxu0
    %v144 = vadd.f32 %v70, %v143
    %v145 = vpop.f32.mrb[0].mxu0
    %v146 = vadd.f32 %v74, %v145
    %147 = vmatprep.mubr.f32.mxu0 0.0
    %148 = vmatmul.mubr.f32.gmra.mrb[0].mxu0 %v32
    %v149 = vpop.f32.mrb[0].mxu0
    %v150 = vadd.f32 %v70, %v149
    %v151 = vpop.f32.mrb[0].mxu0
    %v152 = vadd.f32 %v74, %v151
    %153 = vdwg.mxu0
    %vm154 = vcmp.gt.f32.partialorder %v144, 0.0
    %vm155 = vcmp.gt.f32.partialorder %v146, 0.0
    %vm156 = vcmp.gt.f32.partialorder %v150, 0.0
    %vm157 = vcmp.gt.f32.partialorder %v152, 0.0
    %v158 = vmul.f32 %v144, 0.2
    %v159 = vmul.f32 %v146, 0.2
    %v160 = vmul.f32 %v150, 0.2
    %v161 = vmul.f32 %v152, 0.2
    %v162 = vsel %vm154, %v144, %v158
    %v163 = vsel %vm155, %v146, %v159
    %v164 = vsel %vm156, %v150, %v160
    %v165 = vsel %vm157, %v152, %v161
    %v166 = vld [vmem:[#allocation2 + $0x100] sm:$0xff]
    %v167 = vld [vmem:[#allocation2 + $0x110] sm:$0xff]
    %v168 = vld [vmem:[#allocation2 + $0x120] sm:$0xff]
    %v169 = vld [vmem:[#allocation2 + $0x130] sm:$0xff]
    %v170 = vld [vmem:[#allocation2 + $0x140] sm:$0xff]
    %v171 = vld [vmem:[#allocation2 + $0x150] sm:$0xff]
    %v172 = vld [vmem:[#allocation2 + $0x160] sm:$0xff]
    %v173 = vld [vmem:[#allocation2 + $0x170] sm:$0xff]
    %v174 = vld [vmem:[#allocation2 + $0x180] sm:$0xff]
    %v175 = vld [vmem:[#allocation2 + $0x190] sm:$0xff]
    %v176 = vld [vmem:[#allocation2 + $0x1a0] sm:$0xff]
    %v177 = vld [vmem:[#allocation2 + $0x1b0] sm:$0xff]
    %v178 = vld [vmem:[#allocation2 + $0x1c0] sm:$0xff]
    %v179 = vld [vmem:[#allocation2 + $0x1d0] sm:$0xff]
    %v180 = vld [vmem:[#allocation2 + $0x1e0] sm:$0xff]
    %v181 = vld [vmem:[#allocation2 + $0x1f0] sm:$0xff]
    %v182 = vld [vmem:[#allocation2 + $0x200] sm:$0xff]
    %v183 = vld [vmem:[#allocation2 + $0x210] sm:$0xff]
    %v184 = vld [vmem:[#allocation2 + $0x220] sm:$0xff]
    %v185 = vld [vmem:[#allocation2 + $0x230] sm:$0xff]
    %v186 = vld [vmem:[#allocation2 + $0x240] sm:$0xff]
    %v187 = vld [vmem:[#allocation2 + $0x250] sm:$0xff]
    %v188 = vld [vmem:[#allocation2 + $0x260] sm:$0xff]
    %v189 = vld [vmem:[#allocation2 + $0x270] sm:$0xff]
    %v190 = vld [vmem:[#allocation2 + $0x280] sm:$0xff]
    %v191 = vld [vmem:[#allocation2 + $0x290] sm:$0xff]
    %v192 = vld [vmem:[#allocation2 + $0x2a0] sm:$0xff]
    %v193 = vld [vmem:[#allocation2 + $0x2b0] sm:$0xff]
    %v194 = vld [vmem:[#allocation2 + $0x2c0] sm:$0xff]
    %v195 = vld [vmem:[#allocation2 + $0x2d0] sm:$0xff]
    %v196 = vld [vmem:[#allocation2 + $0x2e0] sm:$0xff]
    %v197 = vld [vmem:[#allocation2 + $0x2f0] sm:$0xff]
    %v198 = vld [vmem:[%s3 + $0x2] sm:$0x1]
    %v200 = vlaneseq
    %v201 = vshrl.u32 %v200, 7
    %v202 = vsub.s32 0, %v201
    %v203 = vrot.slane %v198, %v202
    %205 = vmatprep.subr.mxu0 0.0
    %206 = vmatpush1.msra.mxu0 %v166
    %207 = vmatprep.subr.mxu0 0.0
    %208 = vmatpush1.msra.mxu0 %v167
    %209 = vmatprep.subr.mxu0 0.0
    %210 = vmatpush1.msra.mxu0 %v168
    %211 = vmatprep.subr.mxu0 0.0
    %212 = vmatpush1.msra.mxu0 %v169
    %213 = vmatprep.subr.mxu0 0.0
    %214 = vmatpush1.msra.mxu0 %v170
    %215 = vmatprep.subr.mxu0 0.0
    %216 = vmatpush1.msra.mxu0 %v171
    %217 = vmatprep.subr.mxu0 0.0
    %218 = vmatpush1.msra.mxu0 %v172
    %219 = vmatprep.subr.mxu0 0.0
    %220 = vmatpush1.msra.mxu0 %v173
    %221 = vmatprep.subr.mxu0 0.0
    %222 = vmatpush1.msra.mxu0 %v174
    %223 = vmatprep.subr.mxu0 0.0
    %224 = vmatpush1.msra.mxu0 %v175
    %225 = vmatprep.subr.mxu0 0.0
    %226 = vmatpush1.msra.mxu0 %v176
    %227 = vmatprep.subr.mxu0 0.0
    %228 = vmatpush1.msra.mxu0 %v177
    %229 = vmatprep.subr.mxu0 0.0
    %230 = vmatpush1.msra.mxu0 %v178
    %231 = vmatprep.subr.mxu0 0.0
    %232 = vmatpush1.msra.mxu0 %v179
    %233 = vmatprep.subr.mxu0 0.0
    %234 = vmatpush1.msra.mxu0 %v180
    %235 = vmatprep.subr.mxu0 0.0
    %236 = vmatpush1.msra.mxu0 %v181
    %237 = vmatprep.subr.mxu0 0.0
    %238 = vmatpush1.msra.mxu0 %v182
    %239 = vmatprep.subr.mxu0 0.0
    %240 = vmatpush1.msra.mxu0 %v183
    %241 = vmatprep.subr.mxu0 0.0
    %242 = vmatpush1.msra.mxu0 %v184
    %243 = vmatprep.subr.mxu0 0.0
    %244 = vmatpush1.msra.mxu0 %v185
    %245 = vmatprep.subr.mxu0 0.0
    %246 = vmatpush1.msra.mxu0 %v186
    %247 = vmatprep.subr.mxu0 0.0
    %248 = vmatpush1.msra.mxu0 %v187
    %249 = vmatprep.subr.mxu0 0.0
    %250 = vmatpush1.msra.mxu0 %v188
    %251 = vmatprep.subr.mxu0 0.0
    %252 = vmatpush1.msra.mxu0 %v189
    %253 = vmatprep.subr.mxu0 0.0
    %254 = vmatpush1.msra.mxu0 %v190
    %255 = vmatprep.subr.mxu0 0.0
    %256 = vmatpush1.msra.mxu0 %v191
    %257 = vmatprep.subr.mxu0 0.0
    %258 = vmatpush1.msra.mxu0 %v192
    %259 = vmatprep.subr.mxu0 0.0
    %260 = vmatpush1.msra.mxu0 %v193
    %261 = vmatprep.subr.mxu0 0.0
    %262 = vmatpush1.msra.mxu0 %v194
    %263 = vmatprep.subr.mxu0 0.0
    %264 = vmatpush1.msra.mxu0 %v195
    %265 = vmatprep.subr.mxu0 0.0
    %266 = vmatpush1.msra.mxu0 %v196
    %267 = vmatprep.subr.mxu0 0.0
    %268 = vmatpush1.msra.mxu0 %v197
    %269 = vmatprep.mubr.f32.mxu0 %v163
    %270 = vmatmul.mubr.f32.gmra.mrb[0].mxu0 %v162
    %v271 = vpop.f32.mrb[0].mxu0
    %v272 = vadd.f32 %v203, %v271
    %v273 = vpop.f32.mrb[0].mxu0
    %274 = vmatprep.mubr.f32.mxu0 %v165
    %275 = vmatmul.mubr.f32.gmra.mrb[0].mxu0 %v164
    %v276 = vpop.f32.mrb[0].mxu0
    %v277 = vadd.f32 %v203, %v276
    %v278 = vpop.f32.mrb[0].mxu0
    %279 = vdwg.mxu0
    %vm280 = vcmp.gt.f32.partialorder %v272, 0.0
    %vm281 = vcmp.gt.f32.partialorder %v277, 0.0
    %v282 = vmul.f32 %v272, 0.2
    %v283 = vmul.f32 %v277, 0.2
    %v284 = vsel %vm280, %v272, %v282
    %v285 = vsel %vm281, %v277, %v283
    %v286 = vld [vmem:[#allocation2 + $0x108] sm:$0xff]
    %v287 = vld [vmem:[#allocation2 + $0x118] sm:$0xff]
    %v288 = vld [vmem:[#allocation2 + $0x128] sm:$0xff]
    %v289 = vld [vmem:[#allocation2 + $0x138] sm:$0xff]
    %v290 = vld [vmem:[#allocation2 + $0x148] sm:$0xff]
    %v291 = vld [vmem:[#allocation2 + $0x158] sm:$0xff]
    %v292 = vld [vmem:[#allocation2 + $0x168] sm:$0xff]
    %v293 = vld [vmem:[#allocation2 + $0x178] sm:$0xff]
    %v294 = vld [vmem:[#allocation2 + $0x188] sm:$0xff]
    %v295 = vld [vmem:[#allocation2 + $0x198] sm:$0xff]
    %v296 = vld [vmem:[#allocation2 + $0x1a8] sm:$0xff]
    %v297 = vld [vmem:[#allocation2 + $0x1b8] sm:$0xff]
    %v298 = vld [vmem:[#allocation2 + $0x1c8] sm:$0xff]
    %v299 = vld [vmem:[#allocation2 + $0x1d8] sm:$0xff]
    %v300 = vld [vmem:[#allocation2 + $0x1e8] sm:$0xff]
    %v301 = vld [vmem:[#allocation2 + $0x1f8] sm:$0xff]
    %v302 = vld [vmem:[%s3 + $0x3] sm:$0x1]
    %v304 = vlaneseq
    %v305 = vshrl.u32 %v304, 7
    %v306 = vsub.s32 0, %v305
    %v307 = vrot.slane %v302, %v306
    %309 = vmatprep.subr.mxu0 0.0
    %310 = vmatpush1.msra.mxu0 %v286
    %311 = vmatprep.subr.mxu0 0.0
    %312 = vmatpush1.msra.mxu0 %v287
    %313 = vmatprep.subr.mxu0 0.0
    %314 = vmatpush1.msra.mxu0 %v288
    %315 = vmatprep.subr.mxu0 0.0
    %316 = vmatpush1.msra.mxu0 %v289
    %317 = vmatprep.subr.mxu0 0.0
    %318 = vmatpush1.msra.mxu0 %v290
    %319 = vmatprep.subr.mxu0 0.0
    %320 = vmatpush1.msra.mxu0 %v291
    %321 = vmatprep.subr.mxu0 0.0
    %322 = vmatpush1.msra.mxu0 %v292
    %323 = vmatprep.subr.mxu0 0.0
    %324 = vmatpush1.msra.mxu0 %v293
    %325 = vmatprep.subr.mxu0 0.0
    %326 = vmatpush1.msra.mxu0 %v294
    %327 = vmatprep.subr.mxu0 0.0
    %328 = vmatpush1.msra.mxu0 %v295
    %329 = vmatprep.subr.mxu0 0.0
    %330 = vmatpush1.msra.mxu0 %v296
    %331 = vmatprep.subr.mxu0 0.0
    %332 = vmatpush1.msra.mxu0 %v297
    %333 = vmatprep.subr.mxu0 0.0
    %334 = vmatpush1.msra.mxu0 %v298
    %335 = vmatprep.subr.mxu0 0.0
    %336 = vmatpush1.msra.mxu0 %v299
    %337 = vmatprep.subr.mxu0 0.0
    %338 = vmatpush1.msra.mxu0 %v300
    %339 = vmatprep.subr.mxu0 0.0
    %340 = vmatpush1.msra.mxu0 %v301
    %341 = vmatprep.subr.mxu0 0.0
    %342 = vmatpush1.msra.mxu0 0.0
    %343 = vmatprep.subr.mxu0 0.0
    %344 = vmatpush1.msra.mxu0 0.0
    %345 = vmatprep.subr.mxu0 0.0
    %346 = vmatpush1.msra.mxu0 0.0
    %347 = vmatprep.subr.mxu0 0.0
    %348 = vmatpush1.msra.mxu0 0.0
    %349 = vmatprep.subr.mxu0 0.0
    %350 = vmatpush1.msra.mxu0 0.0
    %351 = vmatprep.subr.mxu0 0.0
    %352 = vmatpush1.msra.mxu0 0.0
    %353 = vmatprep.subr.mxu0 0.0
    %354 = vmatpush1.msra.mxu0 0.0
    %355 = vmatprep.subr.mxu0 0.0
    %356 = vmatpush1.msra.mxu0 0.0
    %357 = vmatprep.subr.mxu0 0.0
    %358 = vmatpush1.msra.mxu0 0.0
    %359 = vmatprep.subr.mxu0 0.0
    %360 = vmatpush1.msra.mxu0 0.0
    %361 = vmatprep.subr.mxu0 0.0
    %362 = vmatpush1.msra.mxu0 0.0
    %363 = vmatprep.subr.mxu0 0.0
    %364 = vmatpush1.msra.mxu0 0.0
    %365 = vmatprep.subr.mxu0 0.0
    %366 = vmatpush1.msra.mxu0 0.0
    %367 = vmatprep.subr.mxu0 0.0
    %368 = vmatpush1.msra.mxu0 0.0
    %369 = vmatprep.subr.mxu0 0.0
    %370 = vmatpush1.msra.mxu0 0.0
    %371 = vmatprep.subr.mxu0 0.0
    %372 = vmatpush1.msra.mxu0 0.0
    %373 = vmatprep.mubr.f32.mxu0 0.0
    %374 = vmatmul.mubr.f32.gmra.mrb[0].mxu0 %v284
    %v375 = vpop.f32.mrb[0].mxu0
    %v376 = vadd.f32 %v307, %v375
    %v377 = vpop.f32.mrb[0].mxu0
    %378 = vmatprep.mubr.f32.mxu0 0.0
    %379 = vmatmul.mubr.f32.gmra.mrb[0].mxu0 %v285
    %v380 = vpop.f32.mrb[0].mxu0
    %v381 = vadd.f32 %v307, %v380
    %v382 = vpop.f32.mrb[0].mxu0
    %383 = vdwg.mxu0
    %v384 = vld [vmem:[#allocation2 + $0x208] sm:$0xff]
    %v385 = vld [vmem:[#allocation2 + $0x218] sm:$0xff]
    %v386 = vld [vmem:[#allocation2 + $0x228] sm:$0xff]
    %v387 = vld [vmem:[#allocation2 + $0x238] sm:$0xff]
    %v388 = vld [vmem:[#allocation2 + $0x248] sm:$0xff]
    %v389 = vld [vmem:[#allocation2 + $0x258] sm:$0xff]
    %v390 = vld [vmem:[#allocation2 + $0x268] sm:$0xff]
    %v391 = vld [vmem:[#allocation2 + $0x278] sm:$0xff]
    %v392 = vld [vmem:[%s3 + $0x4] sm:$0x1]
    %v394 = vlaneseq
    %v395 = vshrl.u32 %v394, 7
    %v396 = vsub.s32 0, %v395
    %v397 = vrot.slane %v392, %v396
    %vm399 = vcmask 523264
    %v401 = vsel %vm399, %v376, 0
    %v404 = vsel %vm399, %v381, 0
    %406 = vmatprep.subr.mxu0 0.0
    %407 = vmatpush1.msra.mxu0 %v384
    %408 = vmatprep.subr.mxu0 0.0
    %409 = vmatpush1.msra.mxu0 %v385
    %410 = vmatprep.subr.mxu0 0.0
    %411 = vmatpush1.msra.mxu0 %v386
    %412 = vmatprep.subr.mxu0 0.0
    %413 = vmatpush1.msra.mxu0 %v387
    %414 = vmatprep.subr.mxu0 0.0
    %415 = vmatpush1.msra.mxu0 %v388
    %416 = vmatprep.subr.mxu0 0.0
    %417 = vmatpush1.msra.mxu0 %v389
    %418 = vmatprep.subr.mxu0 0.0
    %419 = vmatpush1.msra.mxu0 %v390
    %420 = vmatprep.subr.mxu0 0.0
    %421 = vmatpush1.msra.mxu0 %v391
    %422 = vmatprep.subr.mxu0 0.0
    %423 = vmatpush1.msra.mxu0 0.0
    %424 = vmatprep.subr.mxu0 0.0
    %425 = vmatpush1.msra.mxu0 0.0
    %426 = vmatprep.subr.mxu0 0.0
    %427 = vmatpush1.msra.mxu0 0.0
    %428 = vmatprep.subr.mxu0 0.0
    %429 = vmatpush1.msra.mxu0 0.0
    %430 = vmatprep.subr.mxu0 0.0
    %431 = vmatpush1.msra.mxu0 0.0
    %432 = vmatprep.subr.mxu0 0.0
    %433 = vmatpush1.msra.mxu0 0.0
    %434 = vmatprep.subr.mxu0 0.0
    %435 = vmatpush1.msra.mxu0 0.0
    %436 = vmatprep.subr.mxu0 0.0
    %437 = vmatpush1.msra.mxu0 0.0
    %438 = vmatprep.subr.mxu0 0.0
    %439 = vmatpush1.msra.mxu0 0.0
    %440 = vmatprep.subr.mxu0 0.0
    %441 = vmatpush1.msra.mxu0 0.0
    %442 = vmatprep.subr.mxu0 0.0
    %443 = vmatpush1.msra.mxu0 0.0
    %444 = vmatprep.subr.mxu0 0.0
    %445 = vmatpush1.msra.mxu0 0.0
    %446 = vmatprep.subr.mxu0 0.0
    %447 = vmatpush1.msra.mxu0 0.0
    %448 = vmatprep.subr.mxu0 0.0
    %449 = vmatpush1.msra.mxu0 0.0
    %450 = vmatprep.subr.mxu0 0.0
    %451 = vmatpush1.msra.mxu0 0.0
    %452 = vmatprep.subr.mxu0 0.0
    %453 = vmatpush1.msra.mxu0 0.0
    %454 = vmatprep.subr.mxu0 0.0
    %455 = vmatpush1.msra.mxu0 0.0
    %456 = vmatprep.subr.mxu0 0.0
    %457 = vmatpush1.msra.mxu0 0.0
    %458 = vmatprep.subr.mxu0 0.0
    %459 = vmatpush1.msra.mxu0 0.0
    %460 = vmatprep.subr.mxu0 0.0
    %461 = vmatpush1.msra.mxu0 0.0
    %462 = vmatprep.subr.mxu0 0.0
    %463 = vmatpush1.msra.mxu0 0.0
    %464 = vmatprep.subr.mxu0 0.0
    %465 = vmatpush1.msra.mxu0 0.0
    %466 = vmatprep.subr.mxu0 0.0
    %467 = vmatpush1.msra.mxu0 0.0
    %468 = vmatprep.subr.mxu0 0.0
    %469 = vmatpush1.msra.mxu0 0.0
    %470 = vmatprep.mubr.f32.mxu0 0.0
    %471 = vmatmul.mubr.f32.gmra.mrb[0].mxu0 %v401
    %v472 = vpop.f32.mrb[0].mxu0
    %v473 = vadd.f32 %v397, %v472
    %v474 = vpop.f32.mrb[0].mxu0
    %475 = vmatprep.mubr.f32.mxu0 0.0
    %476 = vmatmul.mubr.f32.gmra.mrb[0].mxu0 %v404
    %v477 = vpop.f32.mrb[0].mxu0
    %v478 = vadd.f32 %v397, %v477
    %v479 = vpop.f32.mrb[0].mxu0
    %480 = vdwg.mxu0
    %v481 = vtanh.pop %v473
    %v482 = vtanh.pop %v478
    %v483 = vld [vmem:[%s3 + $0x6] sm:$0x1]
    %v485 = vlaneseq
    %v486 = vshrl.u32 %v485, 7
    %v487 = vsub.s32 0, %v486
    %v488 = vrot.slane %v483, %v487
    %v490 = vmul.f32 %v481, %v488
    %v491 = vmul.f32 %v482, %v488
    %vm492 = vcmask 261120
    %v493 = vsel %vm492, %v490, 0.0
    %494 = vadd.xlane.f32.xlu0 %v493
    %v495 = vpop.xlane.xlu0 %494
    %v496 = vsel %vm492, %v491, 0.0
    %497 = vadd.xlane.f32.xlu0 %v496
    %v498 = vpop.xlane.xlu0 %497
    %v499 = vld [vmem:[%s3 + $0x7] sm:$0x1]
    %v501 = vlaneseq
    %v502 = vshrl.u32 %v501, 7
    %v503 = vsub.s32 0, %v502
    %v504 = vrot.slane %v499, %v503
    %505 = vset.pattern.permute.xlu0 0
    %506 = vperm.xlu0 %505, %v504
    %v507 = vpop.permute.xlu0 %506
    %v509 = vadd.f32 %v495, %v507
    %v510 = vadd.f32 %v498, %v507
    %v511 = vld [vmem:[%s1] sm:$0x3]
    %v513 = vlaneseq
    %v514 = vshrl.u32 %v513, 7
    %v515 = vsub.s32 0, %v514
    %v516 = vrot.slane %v511, %v515
    %518 = vbcast.lane.b32.xlu0 %v516, 256
    %v519 = vpop.permute.xlu0 %518
    %v520 = vlaneseq
    %v521 = vshrl.u32 %v520, 7
    %v522 = vsub.s32 1, %v521
    %v523 = vrot.slane %v511, %v522
    %525 = vbcast.lane.b32.xlu0 %v523, 256
    %v526 = vpop.permute.xlu0 %525
    %v529 = vadd.f32 %v509, %v519
    %v530 = vadd.f32 %v510, %v526
    %533 = vset.pattern.permute.xlu0 0
    %534 = vperm.xlu0 %533, %v529
    %v535 = vpop.permute.xlu0 %534
    %536 = vset.pattern.permute.xlu0 0
    %537 = vperm.xlu0 %536, %v530
    %v538 = vpop.permute.xlu0 %537
    %v539 = vlaneseq
    %v540 = vand.u32 %v539, 127
    %v541 = vlaneseq
    %v542 = vshrl.u32 %v541, 7
    %v543 = vsub.s32 %v540, %v542
    %v544 = vrot.slane %v535, %v543
    %v545 = vlaneseq
    %v546 = vshrl.u32 %v545, 7
    %v547 = vsub.s32 %v540, %v546
    %v548 = vrot.slane %v538, %v547
    %vm549 = vcmask 1041409
    %v550 = vsel %vm549, %v548, %v544
    %vm552 = vcmask 58368
    %v553 = vsel %vm552, %v550, -inf
    %554 = vmax.xlane.f32.xlu0 %v553
    %v555 = vpop.xlane.xlu0 %554
    %v557 = vlaneseq
    %v558 = vshrl.u32 %v557, 7
    %v559 = vsub.s32 0, %v558
    %v560 = vrot.slane %v555, %v559
    %v561 = vlaneseq
    %v562 = vshrl.u32 %v561, 7
    %v563 = vsub.s32 1, %v562
    %v564 = vrot.slane %v555, %v563
    %v567 = vsub.f32 %v529, %v560
    %v568 = vsub.f32 %v530, %v564
    %v569 = vmul.f32 %v567, 1.442695
    %v570 = vpow.pop %v569
    %v571 = vmul.f32 %v568, 1.442695
    %v572 = vpow.pop %v571
    %575 = vset.pattern.permute.xlu0 0
    %576 = vperm.xlu0 %575, %v570
    %v577 = vpop.permute.xlu0 %576
    %578 = vset.pattern.permute.xlu0 0
    %579 = vperm.xlu0 %578, %v572
    %v580 = vpop.permute.xlu0 %579
    %v581 = vlaneseq
    %v582 = vshrl.u32 %v581, 7
    %v583 = vsub.s32 %v540, %v582
    %v584 = vrot.slane %v577, %v583
    %v585 = vlaneseq
    %v586 = vshrl.u32 %v585, 7
    %v587 = vsub.s32 %v540, %v586
    %v588 = vrot.slane %v580, %v587
    %v589 = vsel %vm549, %v588, %v584
    %v591 = vsel %vm552, %v589, 0.0
    %592 = vadd.xlane.f32.xlu0 %v591
    %v593 = vpop.xlane.xlu0 %592
    %v594 = vrcp.pop %v593
    %v596 = vlaneseq
    %v597 = vshrl.u32 %v596, 7
    %v598 = vsub.s32 0, %v597
    %v599 = vrot.slane %v594, %v598
    %v600 = vlaneseq
    %v601 = vshrl.u32 %v600, 7
    %v602 = vsub.s32 1, %v601
    %v603 = vrot.slane %v594, %v602
    %v606 = vmul.f32 %v570, %v599
    %v607 = vmul.f32 %v572, %v603
    %609 = vset.pattern.permute.xlu0 0
    %610 = vperm.xlu0 %609, %v606
    %v611 = vpop.permute.xlu0 %610
    %614 = vset.pattern.permute.xlu0 0
    %615 = vperm.xlu0 %614, %v607
    %v616 = vpop.permute.xlu0 %615
    %v618 = vmul.f32 %v611, %v376
    %v619 = vmul.f32 %v616, %v381
    %v620 = vsel %vm399, %v618, 0.0
    %v621 = vrot.slane %v620, 4
    %v622 = vadd.f32 %v620, %v621
    %v623 = vrot.slane %v622, 2
    %v624 = vadd.f32 %v622, %v623
    %v625 = vrot.slane %v624, 1
    %v626 = vadd.f32 %v624, %v625
    %v627 = vsel %vm399, %v619, 0.0
    %v628 = vrot.slane %v627, 4
    %v629 = vadd.f32 %v627, %v628
    %v630 = vrot.slane %v629, 2
    %v631 = vadd.f32 %v629, %v630
    %v632 = vrot.slane %v631, 1
    %v633 = vadd.f32 %v631, %v632
    %v634 = vld [vmem:[#allocation2 + $0x300] sm:$0xff]
    %v635 = vld [vmem:[#allocation2 + $0x310] sm:$0xff]
    %v636 = vld [vmem:[#allocation2 + $0x320] sm:$0xff]
    %v637 = vld [vmem:[#allocation2 + $0x330] sm:$0xff]
    %v638 = vld [vmem:[#allocation2 + $0x340] sm:$0xff]
    %v639 = vld [vmem:[#allocation2 + $0x350] sm:$0xff]
    %v640 = vld [vmem:[#allocation2 + $0x360] sm:$0xff]
    %v641 = vld [vmem:[#allocation2 + $0x370] sm:$0xff]
    %v642 = vld [vmem:[%s3 + $0x8] sm:$0x1]
    %v644 = vlaneseq
    %v645 = vshrl.u32 %v644, 7
    %v646 = vsub.s32 0, %v645
    %v647 = vrot.slane %v642, %v646
    %v651 = vsel %vm549, %v633, %v626
    %v652 = vsel %vm399, %v651, 0
    %654 = vmatprep.subr.mxu0 0.0
    %655 = vmatpush1.msra.mxu0 %v634
    %656 = vmatprep.subr.mxu0 0.0
    %657 = vmatpush1.msra.mxu0 %v635
    %658 = vmatprep.subr.mxu0 0.0
    %659 = vmatpush1.msra.mxu0 %v636
    %660 = vmatprep.subr.mxu0 0.0
    %661 = vmatpush1.msra.mxu0 %v637
    %662 = vmatprep.subr.mxu0 0.0
    %663 = vmatpush1.msra.mxu0 %v638
    %664 = vmatprep.subr.mxu0 0.0
    %665 = vmatpush1.msra.mxu0 %v639
    %666 = vmatprep.subr.mxu0 0.0
    %667 = vmatpush1.msra.mxu0 %v640
    %668 = vmatprep.subr.mxu0 0.0
    %669 = vmatpush1.msra.mxu0 %v641
    %670 = vmatprep.subr.mxu0 0.0
    %671 = vmatpush1.msra.mxu0 0.0
    %672 = vmatprep.subr.mxu0 0.0
    %673 = vmatpush1.msra.mxu0 0.0
    %674 = vmatprep.subr.mxu0 0.0
    %675 = vmatpush1.msra.mxu0 0.0
    %676 = vmatprep.subr.mxu0 0.0
    %677 = vmatpush1.msra.mxu0 0.0
    %678 = vmatprep.subr.mxu0 0.0
    %679 = vmatpush1.msra.mxu0 0.0
    %680 = vmatprep.subr.mxu0 0.0
    %681 = vmatpush1.msra.mxu0 0.0
    %682 = vmatprep.subr.mxu0 0.0
    %683 = vmatpush1.msra.mxu0 0.0
    %684 = vmatprep.subr.mxu0 0.0
    %685 = vmatpush1.msra.mxu0 0.0
    %686 = vmatprep.subr.mxu0 0.0
    %687 = vmatpush1.msra.mxu0 0.0
    %688 = vmatprep.subr.mxu0 0.0
    %689 = vmatpush1.msra.mxu0 0.0
    %690 = vmatprep.subr.mxu0 0.0
    %691 = vmatpush1.msra.mxu0 0.0
    %692 = vmatprep.subr.mxu0 0.0
    %693 = vmatpush1.msra.mxu0 0.0
    %694 = vmatprep.subr.mxu0 0.0
    %695 = vmatpush1.msra.mxu0 0.0
    %696 = vmatprep.subr.mxu0 0.0
    %697 = vmatpush1.msra.mxu0 0.0
    %698 = vmatprep.subr.mxu0 0.0
    %699 = vmatpush1.msra.mxu0 0.0
    %700 = vmatprep.subr.mxu0 0.0
    %701 = vmatpush1.msra.mxu0 0.0
    %702 = vmatprep.subr.mxu0 0.0
    %703 = vmatpush1.msra.mxu0 0.0
    %704 = vmatprep.subr.mxu0 0.0
    %705 = vmatpush1.msra.mxu0 0.0
    %706 = vmatprep.subr.mxu0 0.0
    %707 = vmatpush1.msra.mxu0 0.0
    %708 = vmatprep.subr.mxu0 0.0
    %709 = vmatpush1.msra.mxu0 0.0
    %710 = vmatprep.subr.mxu0 0.0
    %711 = vmatpush1.msra.mxu0 0.0
    %712 = vmatprep.subr.mxu0 0.0
    %713 = vmatpush1.msra.mxu0 0.0
    %714 = vmatprep.subr.mxu0 0.0
    %715 = vmatpush1.msra.mxu0 0.0
    %716 = vmatprep.subr.mxu0 0.0
    %717 = vmatpush1.msra.mxu0 0.0
    %718 = vmatprep.mubr.f32.mxu0 0.0
    %719 = vmatmul.mubr.f32.gmra.mrb[0].mxu0 %v652
    %v720 = vpop.f32.mrb[0].mxu0
    %v721 = vadd.f32 %v647, %v720
    %v722 = vpop.f32.mrb[0].mxu0
    %723 = vdwg.mxu0
    %vm724 = vcmp.gt.f32.partialorder %v721, 0.0
    %v725 = vmul.f32 %v721, 0.2
    %v726 = vsel %vm724, %v721, %v725
    %v727 = vld [vmem:[#allocation2 + $0x308] sm:$0xff]
    %v728 = vld [vmem:[#allocation2 + $0x318] sm:$0xff]
    %v729 = vld [vmem:[#allocation2 + $0x328] sm:$0xff]
    %v730 = vld [vmem:[#allocation2 + $0x338] sm:$0xff]
    %v731 = vld [vmem:[%s3 + $0x9] sm:$0x1]
    %v733 = vlaneseq
    %v734 = vshrl.u32 %v733, 7
    %v735 = vsub.s32 0, %v734
    %v736 = vrot.slane %v731, %v735
    %v739 = vsel %vm492, %v726, 0
    %741 = vmatprep.subr.mxu0 0.0
    %742 = vmatpush1.msra.mxu0 %v727
    %743 = vmatprep.subr.mxu0 0.0
    %744 = vmatpush1.msra.mxu0 %v728
    %745 = vmatprep.subr.mxu0 0.0
    %746 = vmatpush1.msra.mxu0 %v729
    %747 = vmatprep.subr.mxu0 0.0
    %748 = vmatpush1.msra.mxu0 %v730
    %749 = vmatprep.subr.mxu0 0.0
    %750 = vmatpush1.msra.mxu0 0.0
    %751 = vmatprep.subr.mxu0 0.0
    %752 = vmatpush1.msra.mxu0 0.0
    %753 = vmatprep.subr.mxu0 0.0
    %754 = vmatpush1.msra.mxu0 0.0
    %755 = vmatprep.subr.mxu0 0.0
    %756 = vmatpush1.msra.mxu0 0.0
    %757 = vmatprep.subr.mxu0 0.0
    %758 = vmatpush1.msra.mxu0 0.0
    %759 = vmatprep.subr.mxu0 0.0
    %760 = vmatpush1.msra.mxu0 0.0
    %761 = vmatprep.subr.mxu0 0.0
    %762 = vmatpush1.msra.mxu0 0.0
    %763 = vmatprep.subr.mxu0 0.0
    %764 = vmatpush1.msra.mxu0 0.0
    %765 = vmatprep.subr.mxu0 0.0
    %766 = vmatpush1.msra.mxu0 0.0
    %767 = vmatprep.subr.mxu0 0.0
    %768 = vmatpush1.msra.mxu0 0.0
    %769 = vmatprep.subr.mxu0 0.0
    %770 = vmatpush1.msra.mxu0 0.0
    %771 = vmatprep.subr.mxu0 0.0
    %772 = vmatpush1.msra.mxu0 0.0
    %773 = vmatprep.subr.mxu0 0.0
    %774 = vmatpush1.msra.mxu0 0.0
    %775 = vmatprep.subr.mxu0 0.0
    %776 = vmatpush1.msra.mxu0 0.0
    %777 = vmatprep.subr.mxu0 0.0
    %778 = vmatpush1.msra.mxu0 0.0
    %779 = vmatprep.subr.mxu0 0.0
    %780 = vmatpush1.msra.mxu0 0.0
    %781 = vmatprep.subr.mxu0 0.0
    %782 = vmatpush1.msra.mxu0 0.0
    %783 = vmatprep.subr.mxu0 0.0
    %784 = vmatpush1.msra.mxu0 0.0
    %785 = vmatprep.subr.mxu0 0.0
    %786 = vmatpush1.msra.mxu0 0.0
    %787 = vmatprep.subr.mxu0 0.0
    %788 = vmatpush1.msra.mxu0 0.0
    %789 = vmatprep.subr.mxu0 0.0
    %790 = vmatpush1.msra.mxu0 0.0
    %791 = vmatprep.subr.mxu0 0.0
    %792 = vmatpush1.msra.mxu0 0.0
    %793 = vmatprep.subr.mxu0 0.0
    %794 = vmatpush1.msra.mxu0 0.0
    %795 = vmatprep.subr.mxu0 0.0
    %796 = vmatpush1.msra.mxu0 0.0
    %797 = vmatprep.subr.mxu0 0.0
    %798 = vmatpush1.msra.mxu0 0.0
    %799 = vmatprep.subr.mxu0 0.0
    %800 = vmatpush1.msra.mxu0 0.0
    %801 = vmatprep.subr.mxu0 0.0
    %802 = vmatpush1.msra.mxu0 0.0
    %803 = vmatprep.subr.mxu0 0.0
    %804 = vmatpush1.msra.mxu0 0.0
    %805 = vmatprep.mubr.f32.mxu0 0.0
    %806 = vmatmul.mubr.f32.gmra.mrb[0].mxu0 %v739
    %v807 = vpop.f32.mrb[0].mxu0
    %v808 = vadd.f32 %v736, %v807
    %v809 = vpop.f32.mrb[0].mxu0
    %810 = vdwg.mxu0
    %vm811 = vcmp.gt.f32.partialorder %v808, 0.0
    %v812 = vmul.f32 %v808, 0.2
    %v813 = vsel %vm811, %v808, %v812
    %v814 = vld [vmem:[#allocation2 + $0x348] sm:$0xff]
    %v815 = vld [vmem:[#allocation2 + $0x358] sm:$0xff]
    %v816 = vld [vmem:[%s3 + $0xa] sm:$0x1]
    %v818 = vlaneseq
    %v819 = vshrl.u32 %v818, 7
    %v820 = vsub.s32 0, %v819
    %v821 = vrot.slane %v816, %v820
    %vm823 = vcmask 130048
    %v825 = vsel %vm823, %v813, 0
    %827 = vmatprep.subr.mxu0 0.0
    %828 = vmatpush1.msra.mxu0 %v814
    %829 = vmatprep.subr.mxu0 0.0
    %830 = vmatpush1.msra.mxu0 %v815
    %831 = vmatprep.subr.mxu0 0.0
    %832 = vmatpush1.msra.mxu0 0.0
    %833 = vmatprep.subr.mxu0 0.0
    %834 = vmatpush1.msra.mxu0 0.0
    %835 = vmatprep.subr.mxu0 0.0
    %836 = vmatpush1.msra.mxu0 0.0
    %837 = vmatprep.subr.mxu0 0.0
    %838 = vmatpush1.msra.mxu0 0.0
    %839 = vmatprep.subr.mxu0 0.0
    %840 = vmatpush1.msra.mxu0 0.0
    %841 = vmatprep.subr.mxu0 0.0
    %842 = vmatpush1.msra.mxu0 0.0
    %843 = vmatprep.subr.mxu0 0.0
    %844 = vmatpush1.msra.mxu0 0.0
    %845 = vmatprep.subr.mxu0 0.0
    %846 = vmatpush1.msra.mxu0 0.0
    %847 = vmatprep.subr.mxu0 0.0
    %848 = vmatpush1.msra.mxu0 0.0
    %849 = vmatprep.subr.mxu0 0.0
    %850 = vmatpush1.msra.mxu0 0.0
    %851 = vmatprep.subr.mxu0 0.0
    %852 = vmatpush1.msra.mxu0 0.0
    %853 = vmatprep.subr.mxu0 0.0
    %854 = vmatpush1.msra.mxu0 0.0
    %855 = vmatprep.subr.mxu0 0.0
    %856 = vmatpush1.msra.mxu0 0.0
    %857 = vmatprep.subr.mxu0 0.0
    %858 = vmatpush1.msra.mxu0 0.0
    %859 = vmatprep.subr.mxu0 0.0
    %860 = vmatpush1.msra.mxu0 0.0
    %861 = vmatprep.subr.mxu0 0.0
    %862 = vmatpush1.msra.mxu0 0.0
    %863 = vmatprep.subr.mxu0 0.0
    %864 = vmatpush1.msra.mxu0 0.0
    %865 = vmatprep.subr.mxu0 0.0
    %866 = vmatpush1.msra.mxu0 0.0
    %867 = vmatprep.subr.mxu0 0.0
    %868 = vmatpush1.msra.mxu0 0.0
    %869 = vmatprep.subr.mxu0 0.0
    %870 = vmatpush1.msra.mxu0 0.0
    %871 = vmatprep.subr.mxu0 0.0
    %872 = vmatpush1.msra.mxu0 0.0
    %873 = vmatprep.subr.mxu0 0.0
    %874 = vmatpush1.msra.mxu0 0.0
    %875 = vmatprep.subr.mxu0 0.0
    %876 = vmatpush1.msra.mxu0 0.0
    %877 = vmatprep.subr.mxu0 0.0
    %878 = vmatpush1.msra.mxu0 0.0
    %879 = vmatprep.subr.mxu0 0.0
    %880 = vmatpush1.msra.mxu0 0.0
    %881 = vmatprep.subr.mxu0 0.0
    %882 = vmatpush1.msra.mxu0 0.0
    %883 = vmatprep.subr.mxu0 0.0
    %884 = vmatpush1.msra.mxu0 0.0
    %885 = vmatprep.subr.mxu0 0.0
    %886 = vmatpush1.msra.mxu0 0.0
    %887 = vmatprep.subr.mxu0 0.0
    %888 = vmatpush1.msra.mxu0 0.0
    %889 = vmatprep.subr.mxu0 0.0
    %890 = vmatpush1.msra.mxu0 0.0
    %891 = vmatprep.mubr.f32.mxu0 0.0
    %892 = vmatmul.mubr.f32.gmra.mrb[0].mxu0 %v825
    %v893 = vpop.f32.mrb[0].mxu0
    %v894 = vadd.f32 %v821, %v893
    %v895 = vpop.f32.mrb[0].mxu0
    %896 = vdwg.mxu0
    %899 = vrot.lane.b32.xlu0 %v894, 64
    %v900 = vpop.permute.xlu0 %899
    %v902 = vsel %vm399, %v651, %v900
    %vm903 = vcmask 539648
    %v904 = vsel %vm903, %v902, 0.0
    %905 = vst [vmem:[%s4] sm:$0x3] %v904
    // Predicated region
    $region22: #{forward.1} parent=1 // pred_check
      _
    $region23: #{forward.1} parent=1 // pred_check_branch
      %907 = sbr.rel (0) target = $region25
    $region24: #{forward.1} parent=1 // pred_region
      _
    $region25: #{forward.1} parent=1 // pred_fallthru
      _
    // Predicated region
    $region26: #{forward.1} parent=1 // pred_check
      _
    $region27: #{forward.1} parent=1 // pred_check_branch
      %909 = sbr.rel (0) target = $region29
    $region28: #{forward.1} parent=1 // pred_region
      _
    $region29: #{forward.1} parent=1 // pred_fallthru
      _
    %910 = vsyncpa [#allocation3], 1

</llo_original>
